<compile_context>
chip_gen: v7x
topology: tpu7x:2x2x1
jax: 0.10.0
libtpu: 0.0.40
codegen_flags: <defaults>
</compile_context>

<pallas_src>
import functools

import jax
import jax.numpy as jnp
from jax import lax
from jax.experimental import pallas as pl
from jax.experimental.pallas import tpu as pltpu


def _round_up(x, m):
    return (x + m - 1) // m * m


# ---------------------------------------------------------------------------
# Fused kernel: stem conv (im2col matmul) + swish + concat-pool + linear head
# grid = (N, num_spatial_tiles); spatial axis is a reduction ("arbitrary"),
# batch axis is "parallel" (sharded across TensorCores).
# ---------------------------------------------------------------------------
def _fused_kernel(patch_ref, wstem_ref, bstem_ref, wfc_ref, bfc_ref,
                  out_ref, mx_ref, sm_ref, *, true_hw, padded):
    t = pl.program_id(1)
    nt = pl.num_programs(1)

    @pl.when(t == 0)
    def _init():
        mx_ref[...] = jnp.full_like(mx_ref, -jnp.inf)
        sm_ref[...] = jnp.zeros_like(sm_ref)

    # ---- stem conv as matmul (bf16 in, f32 acc) + bias + swish -------------
    # lane axis = spatial (HW): every vreg is fully dense.
    p = patch_ref[0]                                              # (F, thw) bf16
    y = jnp.dot(wstem_ref[...], p, preferred_element_type=jnp.float32)
    y = y + bstem_ref[...]                                        # (Cout, thw)
    y = y * jax.nn.sigmoid(y)                                     # swish (f32)

    # ---- running max / sum over the spatial (lane) axis ---------------------
    def _accumulate(yv):
        mx_ref[...] = jnp.maximum(mx_ref[...],
                                  jnp.max(yv, axis=-1, keepdims=True))
        sm_ref[...] = sm_ref[...] + jnp.sum(yv, axis=-1, keepdims=True)

    if padded:
        thw = p.shape[1]

        @pl.when(t < nt - 1)
        def _interior():                  # unmasked fast path (no iota/where)
            _accumulate(y)

        @pl.when(t == nt - 1)
        def _last():                      # only the final tile carries pad rows
            col = t * thw + lax.broadcasted_iota(jnp.int32, (1, thw), 1)
            valid = col < true_hw
            mx_ref[...] = jnp.maximum(
                mx_ref[...],
                jnp.max(jnp.where(valid, y, -jnp.inf), axis=-1, keepdims=True))
            sm_ref[...] = sm_ref[...] + jnp.sum(
                jnp.where(valid, y, 0.0), axis=-1, keepdims=True)
    else:
        _accumulate(y)

    # ---- epilogue: concat-pool + linear head -------------------------------
    @pl.when(t == nt - 1)
    def _finalize():
        cout = mx_ref.shape[0]
        mp = mx_ref[...]                                # (Cout, 1)  max-pool
        ap = sm_ref[...] * (1.0 / true_hw)              # (Cout, 1)  avg-pool
        # out = [mp ; ap] @ W_fc + b_fc, done as broadcast-mul + sublane
        # reduce so the (1, Kp) result stays lane-dense with no transpose.
        res = (jnp.sum(wfc_ref[:cout] * mp, axis=0, keepdims=True)
               + jnp.sum(wfc_ref[cout:] * ap, axis=0, keepdims=True)
               + bfc_ref[...])                          # (1, Kp)
        out_ref[0] = res


@functools.partial(jax.jit, static_argnames=("stride", "padding", "max_tile_hw"))
def fused_forward(x, w_stem, b_stem, w_fc, b_fc, *, stride=2, padding=1,
                  max_tile_hw=32768):
    """x: (N, Cin, H, W) f32; w_stem: (Cout, Cin, 3, 3); w_fc: (2*Cout, K)."""
    N, Cin, H, W = x.shape
    Cout, _, kh, kw = w_stem.shape
    K = w_fc.shape[1]

    # im2col: (N, F=Cin*kh*kw, Ho, Wo), feature order (Cin, kh, kw).
    patches = lax.conv_general_dilated_patches(
        x, (kh, kw), (stride, stride),
        [(padding, padding), (padding, padding)])
    _, F, Ho, Wo = patches.shape
    HW = Ho * Wo
    # Keep (N, F, HW): HW is the minor (lane) axis; bf16 halves the dominant
    # HBM stream. Under jit this fuses with patch extraction (no extra pass).
    pm = patches.reshape(N, F, HW).astype(jnp.bfloat16)

    # Spatial tiling: whole-HW tile when it fits, else 128-aligned tiles.
    if HW <= max_tile_hw:
        thw, num_t, padded = HW, 1, False
    else:
        thw = max(128, max_tile_hw - max_tile_hw % 128)
        HWp = _round_up(HW, thw)
        num_t = HWp // thw
        padded = HWp != HW
        if padded:
            pm = jnp.pad(pm, ((0, 0), (0, 0), (0, HWp - HW)))

    wstem = w_stem.reshape(Cout, F).astype(jnp.bfloat16)          # (Cout, F)
    bstem = b_stem.reshape(Cout, 1).astype(jnp.float32)           # (Cout, 1)

    # Head weights folded into one operand; lane-dense Kp output.
    Kp = _round_up(K, 128)
    wfc = jnp.pad(w_fc.astype(jnp.float32), ((0, 0), (0, Kp - K)))   # (2C, Kp)
    bfc = jnp.pad(b_fc.astype(jnp.float32), (0, Kp - K)).reshape(1, Kp)

    # Explicit scoped-VMEM budget (v5e default is only 16 MiB of 128).
    est = (2 * F * thw * 2            # double-buffered bf16 patch tile
           + 4 * Cout * thw * 4       # y + elementwise temporaries (f32)
           + 2 * (2 * Cout) * Kp * 4  # head weights
           + (2 << 20))
    vmem_limit = int(min(max(2 * est, 32 << 20), 48 << 20))

    out = pl.pallas_call(
        functools.partial(_fused_kernel, true_hw=HW, padded=padded),
        out_shape=jax.ShapeDtypeStruct((N, 1, Kp), jnp.float32),
        grid_spec=pltpu.PrefetchScalarGridSpec(
            num_scalar_prefetch=0,
            grid=(N, num_t),                    # batch parallel, HW reduction
            in_specs=[
                pl.BlockSpec((1, F, thw), lambda n, t: (n, 0, t)),
                pl.BlockSpec((Cout, F), lambda n, t: (0, 0)),
                pl.BlockSpec((Cout, 1), lambda n, t: (0, 0)),
                pl.BlockSpec((2 * Cout, Kp), lambda n, t: (0, 0)),
                pl.BlockSpec((1, Kp), lambda n, t: (0, 0)),
            ],
            out_specs=pl.BlockSpec((1, 1, Kp), lambda n, t: (n, 0, 0)),
            scratch_shapes=[
                pltpu.VMEM((Cout, 1), jnp.float32),   # running max
                pltpu.VMEM((Cout, 1), jnp.float32),   # running sum
            ]),
        compiler_params=pltpu.CompilerParams(
            dimension_semantics=("parallel", "arbitrary"),
            vmem_limit_bytes=vmem_limit),
    )(pm, wstem, bstem, wfc, bfc)
    return out[:, 0, :K]


# ---------------------------------------------------------------------------
# BaseModel1 equivalent
# ---------------------------------------------------------------------------
class BaseModel1Pallas:
    def __init__(self, model_name="efficientnet-b0", num_classes=200, key=None):
        assert model_name.startswith("efficientnet")
        if key is None:
            key = jax.random.PRNGKey(0)
        k1, k2, k3, k4 = jax.random.split(key, 4)
        self.cin, self.cstem = 3, 32
        # stem conv: Conv2d(3, 32, k=3, s=2, p=1)
        self.w_stem = 0.1 * jax.random.normal(
            k1, (self.cstem, self.cin, 3, 3), jnp.float32)
        self.b_stem = 0.01 * jax.random.normal(k2, (self.cstem,), jnp.float32)
        # replaced FC head: Linear(in_features*2 -> num_classes)
        self.w_fc = 0.05 * jax.random.normal(
            k3, (2 * self.cstem, num_classes), jnp.float32)
        self.b_fc = 0.01 * jax.random.normal(k4, (num_classes,), jnp.float32)

    def __call__(self, x):
        return fused_forward(x, self.w_stem, self.b_stem, self.w_fc, self.b_fc)


def _reference_forward(x, w_stem, b_stem, w_fc, b_fc):
    """Pure-JAX reference (f32) for correctness check."""
    y = lax.conv_general_dilated(
        x, w_stem, (2, 2), [(1, 1), (1, 1)],
        dimension_numbers=("NCHW", "OIHW", "NCHW"))
    y = y + b_stem[None, :, None, None]
    y = y * jax.nn.sigmoid(y)                       # (N, C, Ho, Wo)
    mp = jnp.max(y, axis=(2, 3))
    ap = jnp.mean(y, axis=(2, 3))
    pooled = jnp.concatenate([mp, ap], axis=1)      # (N, 2C)
    return pooled @ w_fc + b_fc[None, :]


if __name__ == "__main__":
    key = jax.random.PRNGKey(0)
    kx, kp = jax.random.split(key)
    x = jax.random.normal(kx, (2, 3, 16, 16), jnp.float32)  # NCHW, like PyTorch
    model = BaseModel1Pallas("efficientnet-b0", num_classes=200, key=kp)

    out = model(x)
    out = jax.block_until_ready(out)
    assert out.shape == (2, 200), out.shape
    assert bool(jnp.all(jnp.isfinite(out)))

    ref = _reference_forward(x, model.w_stem, model.b_stem, model.w_fc,
                             model.b_fc)
    max_err = float(jnp.max(jnp.abs(out - ref)))
    assert max_err < 5e-2, f"max abs err vs reference: {max_err}"

    print("KERNEL_OK")
</pallas_src>

<mosaic_0001>
module attributes {stable_mosaic.version = 11 : i64} {
  func.func @_fused_kernel(%arg0: i32, %arg1: i32, %arg2: memref<1x27x64xbf16, #tpu.memory_space<vmem>>, %arg3: memref<32x27xbf16, #tpu.memory_space<vmem>>, %arg4: memref<32x1xf32, #tpu.memory_space<vmem>>, %arg5: memref<64x256xf32, #tpu.memory_space<vmem>>, %arg6: memref<1x256xf32, #tpu.memory_space<vmem>>, %arg7: memref<1x1x256xf32, #tpu.memory_space<vmem>>, %arg8: memref<32x1xf32, #tpu.memory_space<vmem>>, %arg9: memref<32x1xf32, #tpu.memory_space<vmem>>) attributes {dimension_semantics = [#tpu.dimension_semantics<parallel>, #tpu.dimension_semantics<arbitrary>], iteration_bounds = array<i64: 2, 1>, scalar_prefetch = 0 : i64, scratch_operands = 2 : i64, tpu.core_type = #tpu.core_type<tc>, window_params = [{transform_indices = @transform_0, window_bounds = array<i64: 1, 27, 64>}, {pipeline_mode = #tpu.pipeline_mode<synchronous>, transform_indices = @transform_1, window_bounds = array<i64: 32, 27>}, {pipeline_mode = #tpu.pipeline_mode<synchronous>, transform_indices = @transform_2, window_bounds = array<i64: 32, 1>}, {pipeline_mode = #tpu.pipeline_mode<synchronous>, transform_indices = @transform_3, window_bounds = array<i64: 64, 256>}, {pipeline_mode = #tpu.pipeline_mode<synchronous>, transform_indices = @transform_4, window_bounds = array<i64: 1, 256>}, {transform_indices = @transform_5, window_bounds = array<i64: 1, 1, 256>}]} {
    %c0_i32 = arith.constant 0 : i32
    %0 = arith.cmpi eq, %arg1, %c0_i32 : i32
    %1 = arith.extui %0 : i1 to i32
    %c0_i32_0 = arith.constant 0 : i32
    %2 = arith.cmpi ne, %1, %c0_i32_0 : i32
    scf.if %2 {
      %cst_20 = arith.constant 0xFF800000 : f32
      %29 = vector.broadcast %cst_20 : f32 to vector<32x1xf32>
      %c0_21 = arith.constant 0 : index
      %c0_22 = arith.constant 0 : index
      %30 = vector.load %arg8[%c0_21, %c0_22] : memref<32x1xf32, #tpu.memory_space<vmem>>, vector<32x1xf32>
      tpu.vector_store %arg8[%c0_21, %c0_22], %29 {strides = array<i32>} : memref<32x1xf32, #tpu.memory_space<vmem>>, vector<32x1xf32>,
      %cst_23 = arith.constant 0.000000e+00 : f32
      %31 = vector.broadcast %cst_23 : f32 to vector<32x1xf32>
      %c0_24 = arith.constant 0 : index
      %c0_25 = arith.constant 0 : index
      %32 = vector.load %arg9[%c0_24, %c0_25] : memref<32x1xf32, #tpu.memory_space<vmem>>, vector<32x1xf32>
      tpu.vector_store %arg9[%c0_24, %c0_25], %31 {strides = array<i32>} : memref<32x1xf32, #tpu.memory_space<vmem>>, vector<32x1xf32>,
    } else {
    }
    %c0 = arith.constant 0 : index
    %c0_1 = arith.constant 0 : index
    %c0_2 = arith.constant 0 : index
    %3 = vector.load %arg2[%c0, %c0_1, %c0_2] : memref<1x27x64xbf16, #tpu.memory_space<vmem>>, vector<1x27x64xbf16>
    %4 = vector.shape_cast %3 : vector<1x27x64xbf16> to vector<27x64xbf16>
    %c0_3 = arith.constant 0 : index
    %c0_4 = arith.constant 0 : index
    %5 = vector.load %arg3[%c0_3, %c0_4] : memref<32x27xbf16, #tpu.memory_space<vmem>>, vector<32x27xbf16>
    %cst = arith.constant dense<0.000000e+00> : vector<32x64xf32>
    %6 = tpu.matmul %5, %4, %cst {dimension_numbers = #tpu.dot_dimension_numbers<[1], [0], [0], [1], [0, 0, 1, 1], [], []>} : vector<32x27xbf16>, vector<27x64xbf16>, vector<32x64xf32> -> vector<32x64xf32>
    %c0_5 = arith.constant 0 : index
    %c0_6 = arith.constant 0 : index
    %7 = vector.load %arg4[%c0_5, %c0_6] : memref<32x1xf32, #tpu.memory_space<vmem>>, vector<32x1xf32>
    %8 = vector.broadcast %7 : vector<32x1xf32> to vector<32x64xf32>
    %9 = arith.addf %6, %8 : vector<32x64xf32>
    %10 = arith.negf %9 : vector<32x64xf32>
    %11 = math.exp %10 : vector<32x64xf32>
    %cst_7 = arith.constant 1.000000e+00 : f32
    %12 = vector.broadcast %cst_7 : f32 to vector<32x64xf32>
    %13 = arith.addf %12, %11 : vector<32x64xf32>
    %14 = arith.divf %12, %13 : vector<32x64xf32>
    %15 = arith.mulf %9, %14 : vector<32x64xf32>
    %c0_8 = arith.constant 0 : index
    %c0_9 = arith.constant 0 : index
    %16 = vector.load %arg8[%c0_8, %c0_9] : memref<32x1xf32, #tpu.memory_space<vmem>>, vector<32x1xf32>
    %cst_10 = arith.constant dense<0xFF800000> : vector<32xf32>
    %17 = vector.multi_reduction <maximumf>, %15, %cst_10 [1] : vector<32x64xf32> to vector<32xf32>
    %18 = vector.shape_cast %17 : vector<32xf32> to vector<32x1xf32>
    %19 = arith.maximumf %16, %18 : vector<32x1xf32>
    %c0_11 = arith.constant 0 : index
    %c0_12 = arith.constant 0 : index
    %20 = vector.load %arg8[%c0_11, %c0_12] : memref<32x1xf32, #tpu.memory_space<vmem>>, vector<32x1xf32>
    tpu.vector_store %arg8[%c0_11, %c0_12], %19 {strides = array<i32>} : memref<32x1xf32, #tpu.memory_space<vmem>>, vector<32x1xf32>,
    %c0_13 = arith.constant 0 : index
    %c0_14 = arith.constant 0 : index
    %21 = vector.load %arg9[%c0_13, %c0_14] : memref<32x1xf32, #tpu.memory_space<vmem>>, vector<32x1xf32>
    %cst_15 = arith.constant dense<0.000000e+00> : vector<32xf32>
    %22 = vector.multi_reduction <add>, %15, %cst_15 [1] : vector<32x64xf32> to vector<32xf32>
    %23 = vector.shape_cast %22 : vector<32xf32> to vector<32x1xf32>
    %24 = arith.addf %21, %23 : vector<32x1xf32>
    %c0_16 = arith.constant 0 : index
    %c0_17 = arith.constant 0 : index
    %25 = vector.load %arg9[%c0_16, %c0_17] : memref<32x1xf32, #tpu.memory_space<vmem>>, vector<32x1xf32>
    tpu.vector_store %arg9[%c0_16, %c0_17], %24 {strides = array<i32>} : memref<32x1xf32, #tpu.memory_space<vmem>>, vector<32x1xf32>,
    %c0_i32_18 = arith.constant 0 : i32
    %26 = arith.cmpi eq, %arg1, %c0_i32_18 : i32
    %27 = arith.extui %26 : i1 to i32
    %c0_i32_19 = arith.constant 0 : i32
    %28 = arith.cmpi ne, %27, %c0_i32_19 : i32
    scf.if %28 {
      %c0_20 = arith.constant 0 : index
      %c0_21 = arith.constant 0 : index
      %29 = vector.load %arg8[%c0_20, %c0_21] : memref<32x1xf32, #tpu.memory_space<vmem>>, vector<32x1xf32>
      %c0_22 = arith.constant 0 : index
      %c0_23 = arith.constant 0 : index
      %30 = vector.load %arg9[%c0_22, %c0_23] : memref<32x1xf32, #tpu.memory_space<vmem>>, vector<32x1xf32>
      %cst_24 = arith.constant 1.562500e-02 : f32
      %31 = vector.broadcast %cst_24 : f32 to vector<32x1xf32>
      %32 = arith.mulf %30, %31 : vector<32x1xf32>
      %c0_25 = arith.constant 0 : index
      %c0_26 = arith.constant 0 : index
      %33 = vector.load %arg5[%c0_25, %c0_26] : memref<64x256xf32, #tpu.memory_space<vmem>>, vector<32x256xf32>
      %34 = vector.broadcast %29 : vector<32x1xf32> to vector<32x256xf32>
      %35 = arith.mulf %33, %34 : vector<32x256xf32>
      %cst_27 = arith.constant dense<0.000000e+00> : vector<256xf32>
      %36 = vector.multi_reduction <add>, %35, %cst_27 [0] : vector<32x256xf32> to vector<256xf32>
      %37 = vector.shape_cast %36 : vector<256xf32> to vector<1x256xf32>
      %c32 = arith.constant 32 : index
      %c0_28 = arith.constant 0 : index
      %38 = vector.load %arg5[%c32, %c0_28] : memref<64x256xf32, #tpu.memory_space<vmem>>, vector<32x256xf32>
      %39 = vector.broadcast %32 : vector<32x1xf32> to vector<32x256xf32>
      %40 = arith.mulf %38, %39 : vector<32x256xf32>
      %cst_29 = arith.constant dense<0.000000e+00> : vector<256xf32>
      %41 = vector.multi_reduction <add>, %40, %cst_29 [0] : vector<32x256xf32> to vector<256xf32>
      %42 = vector.shape_cast %41 : vector<256xf32> to vector<1x256xf32>
      %43 = arith.addf %37, %42 : vector<1x256xf32>
      %c0_30 = arith.constant 0 : index
      %c0_31 = arith.constant 0 : index
      %44 = vector.load %arg6[%c0_30, %c0_31] : memref<1x256xf32, #tpu.memory_space<vmem>>, vector<1x256xf32>
      %45 = arith.addf %43, %44 : vector<1x256xf32>
      %c0_32 = arith.constant 0 : index
      %c0_33 = arith.constant 0 : index
      %c0_34 = arith.constant 0 : index
      %46 = vector.load %arg7[%c0_32, %c0_33, %c0_34] : memref<1x1x256xf32, #tpu.memory_space<vmem>>, vector<1x1x256xf32>
      %47 = vector.shape_cast %46 : vector<1x1x256xf32> to vector<1x256xf32>
      %48 = vector.shape_cast %45 : vector<1x256xf32> to vector<1x1x256xf32>
      tpu.vector_store %arg7[%c0_32, %c0_33, %c0_34], %48 {strides = array<i32>} : memref<1x1x256xf32, #tpu.memory_space<vmem>>, vector<1x1x256xf32>,
    } else {
    }
    return
  }
  func.func @transform_0(%arg0: i32, %arg1: i32) -> (i32, i32, i32) {
    %c0_i32 = arith.constant 0 : i32
    %c0_i32_0 = arith.constant 0 : i32
    return %arg0, %c0_i32, %arg1 : i32, i32, i32
  }
  func.func @transform_1(%arg0: i32, %arg1: i32) -> (i32, i32) {
    %c0_i32 = arith.constant 0 : i32
    %c0_i32_0 = arith.constant 0 : i32
    %c0_i32_1 = arith.constant 0 : i32
    return %c0_i32, %c0_i32_0 : i32, i32
  }
  func.func @transform_2(%arg0: i32, %arg1: i32) -> (i32, i32) {
    %c0_i32 = arith.constant 0 : i32
    %c0_i32_0 = arith.constant 0 : i32
    %c0_i32_1 = arith.constant 0 : i32
    return %c0_i32, %c0_i32_0 : i32, i32
  }
  func.func @transform_3(%arg0: i32, %arg1: i32) -> (i32, i32) {
    %c0_i32 = arith.constant 0 : i32
    %c0_i32_0 = arith.constant 0 : i32
    %c0_i32_1 = arith.constant 0 : i32
    return %c0_i32, %c0_i32_0 : i32, i32
  }
  func.func @transform_4(%arg0: i32, %arg1: i32) -> (i32, i32) {
    %c0_i32 = arith.constant 0 : i32
    %c0_i32_0 = arith.constant 0 : i32
    %c0_i32_1 = arith.constant 0 : i32
    return %c0_i32, %c0_i32_0 : i32, i32
  }
  func.func @transform_5(%arg0: i32, %arg1: i32) -> (i32, i32, i32) {
    %c0_i32 = arith.constant 0 : i32
    %c0_i32_0 = arith.constant 0 : i32
    %c0_i32_1 = arith.constant 0 : i32
    return %arg0, %c0_i32, %c0_i32_0 : i32, i32, i32
  }
}

</mosaic_0001>

<llo_original>
// kernel: fused_forward.1
$region0: #{fused_forward.1}
  #allocation0 [shape = 'u32[]', space=smem, size = 0x4, offset = 0x4, fixed_abs, tag = 'smem constant byte address 0x4 - core index']
  #allocation1 [shape = 'u32[144,128]{1,0:T(1,128)}', space=vmem, size = 0x12000, scoped, tag = 'internal scratch']
  #allocation2 [shape = 'f32[32,1]{1,0:T(8,128)}', space=vmem, size = 0x4000, scoped, tag = 'scratch operand']
  #allocation3 [shape = 'f32[32,1]{1,0:T(8,128)}', space=vmem, size = 0x4000, scoped, tag = 'scratch operand']
  %s0 = inlined_call_operand.vmem [shape: bf16[2,27,64], index: 0, kind: input, shape index: {}]
  %s1 = inlined_call_operand.vmem [shape: bf16[32,27], index: 1, kind: input, shape index: {}]
  %s2 = inlined_call_operand.vmem [shape: f32[32,1], index: 2, kind: input, shape index: {}]
  %s3 = inlined_call_operand.vmem [shape: f32[64,256], index: 3, kind: input, shape index: {}]
  %s4 = inlined_call_operand.vmem [shape: f32[1,256], index: 4, kind: input, shape index: {}]
  %s5 = inlined_call_operand.vmem [shape: f32[2,1,256], index: 5, kind: output, shape index: {}]
  %s6 = sld [smem:[#allocation0]]
  $region61: #{fused_forward.1} parent=0
    _
  %s8 = ssub.s32 1, %s6
  %s9 = scalar_select 0, %s8, %s6
  loop: start=0, step=1, limit=4
  $region2: #{fused_forward.1} parent=0 // loop_pre_header
    _
  $region3: #{fused_forward.1} parent=0 // loop_header
    %s11 = sphi 0, %s15
    %p12 = scmp.ge.s32.totalorder %s11, 4
    %s18 = sphi 0, %s30
    %s19 = sphi 0, %s26
    %s20 = sphi 0, %s18
    %s21 = sphi 0, %s19
    %s22 = sphi 0, %s20
    %s23 = sphi 0, %s21
    %s35 = sphi 0, %s37
    %s38 = sphi 0, %s35
    %s39 = sphi 0, %s38
    %s55 = sphi 0, %s39
    %s59 = sphi 0, %s59
    %s61 = sphi 0, %s59
    %s62 = sphi 0, %s61
    %s76 = sphi 0, %s62
    %s80 = sphi 0, %s80
    %s82 = sphi 0, %s80
    %s83 = sphi 0, %s82
    %s97 = sphi 0, %s83
    %s101 = sphi 0, %s101
    %s103 = sphi 0, %s101
    %s104 = sphi 0, %s103
    %s118 = sphi 0, %s104
    %s122 = sphi 0, %s122
    %s124 = sphi 0, %s122
    %s125 = sphi 0, %s124
    %s139 = sphi 0, %s125
    %s145 = sphi 0, %s147
    %s148 = sphi 0, %s145
    %s149 = sphi 0, %s148
    %s165 = sphi 0, %s149
  $region4: #{fused_forward.1} parent=0 // loop_header_branch
    %14 = sbr.rel (%p12) target = $region8
  $region5: #{fused_forward.1} parent=0 // loop_body
    %s16 = ssub.s32 %s11, 1
    %s17 = ssub.s32 %s11, 2
    %s24 = sadd.s32 1, %s19
    %p25 = scmp.ge.s32.totalorder %s24, 1
    %s26 = scalar_select %p25, 0, %s24
    %s27 = sadd.s32 1, %s18
    %s28 = scalar_select %p25, %s27, %s18
    %p29 = scmp.ge.s32.totalorder %s28, 2
    %s30 = scalar_select %p29, 0, %s28
    %s31 = ssub.s32 %s18, %s30
    %s32 = ssub.s32 %s19, %s26
    %s33 = sor.u32 %s31, %s32
    %p34 = scmp.eq.s32.totalorder %s33, 0
    %s36 = sadd.s32 %s35, 1
    %s37 = scalar_select %p34, %s35, %s36
    %p40 = pneg %p34
    %p41 = scmp.eq.s32.totalorder %s11, 1
    %p42 = por %p40, %p41
    %p43 = scmp.ne.s32.totalorder %s35, %s38
    %p44 = scmp.eq.s32.totalorder %s11, 0
    %p45 = por %p43, %p44
    %p46 = scmp.ne.s32.totalorder %s35, %s38
    %p47 = scmp.eq.s32.totalorder %s16, 1
    %p48 = por %p46, %p47
    %p49 = scmp.ne.s32.totalorder %s38, %s39
    %p50 = scmp.eq.s32.totalorder %s16, 0
    %p51 = por %p49, %p50
    %p52 = scmp.ne.s32.totalorder %s38, %s39
    %p53 = scmp.eq.s32.totalorder %s17, 1
    %p54 = por %p52, %p53
    %p56 = scmp.ne.s32.totalorder %s39, %s55
    %p57 = scmp.eq.s32.totalorder %s17, 0
    %p58 = por %p56, %p57
    %s60 = sadd.s32 %s59, 1
    %p63 = scmp.eq.s32.totalorder %s11, 1
    %p64 = scmp.ne.s32.totalorder %s59, %s61
    %p65 = scmp.eq.s32.totalorder %s11, 0
    %p66 = por %p64, %p65
    %p67 = scmp.ne.s32.totalorder %s59, %s61
    %p68 = scmp.eq.s32.totalorder %s16, 1
    %p69 = por %p67, %p68
    %p70 = scmp.ne.s32.totalorder %s61, %s62
    %p71 = scmp.eq.s32.totalorder %s16, 0
    %p72 = por %p70, %p71
    %p73 = scmp.ne.s32.totalorder %s61, %s62
    %p74 = scmp.eq.s32.totalorder %s17, 1
    %p75 = por %p73, %p74
    %p77 = scmp.ne.s32.totalorder %s62, %s76
    %p78 = scmp.eq.s32.totalorder %s17, 0
    %p79 = por %p77, %p78
    %s81 = sadd.s32 %s80, 1
    %p84 = scmp.eq.s32.totalorder %s11, 1
    %p85 = scmp.ne.s32.totalorder %s80, %s82
    %p86 = scmp.eq.s32.totalorder %s11, 0
    %p87 = por %p85, %p86
    %p88 = scmp.ne.s32.totalorder %s80, %s82
    %p89 = scmp.eq.s32.totalorder %s16, 1
    %p90 = por %p88, %p89
    %p91 = scmp.ne.s32.totalorder %s82, %s83
    %p92 = scmp.eq.s32.totalorder %s16, 0
    %p93 = por %p91, %p92
    %p94 = scmp.ne.s32.totalorder %s82, %s83
    %p95 = scmp.eq.s32.totalorder %s17, 1
    %p96 = por %p94, %p95
    %p98 = scmp.ne.s32.totalorder %s83, %s97
    %p99 = scmp.eq.s32.totalorder %s17, 0
    %p100 = por %p98, %p99
    %s102 = sadd.s32 %s101, 1
    %p105 = scmp.eq.s32.totalorder %s11, 1
    %p106 = scmp.ne.s32.totalorder %s101, %s103
    %p107 = scmp.eq.s32.totalorder %s11, 0
    %p108 = por %p106, %p107
    %p109 = scmp.ne.s32.totalorder %s101, %s103
    %p110 = scmp.eq.s32.totalorder %s16, 1
    %p111 = por %p109, %p110
    %p112 = scmp.ne.s32.totalorder %s103, %s104
    %p113 = scmp.eq.s32.totalorder %s16, 0
    %p114 = por %p112, %p113
    %p115 = scmp.ne.s32.totalorder %s103, %s104
    %p116 = scmp.eq.s32.totalorder %s17, 1
    %p117 = por %p115, %p116
    %p119 = scmp.ne.s32.totalorder %s104, %s118
    %p120 = scmp.eq.s32.totalorder %s17, 0
    %p121 = por %p119, %p120
    %s123 = sadd.s32 %s122, 1
    %p126 = scmp.eq.s32.totalorder %s11, 1
    %p127 = scmp.ne.s32.totalorder %s122, %s124
    %p128 = scmp.eq.s32.totalorder %s11, 0
    %p129 = por %p127, %p128
    %p130 = scmp.ne.s32.totalorder %s122, %s124
    %p131 = scmp.eq.s32.totalorder %s16, 1
    %p132 = por %p130, %p131
    %p133 = scmp.ne.s32.totalorder %s124, %s125
    %p134 = scmp.eq.s32.totalorder %s16, 0
    %p135 = por %p133, %p134
    %p136 = scmp.ne.s32.totalorder %s124, %s125
    %p137 = scmp.eq.s32.totalorder %s17, 1
    %p138 = por %p136, %p137
    %p140 = scmp.ne.s32.totalorder %s125, %s139
    %p141 = scmp.eq.s32.totalorder %s17, 0
    %p142 = por %p140, %p141
    %s143 = ssub.s32 %s18, %s30
    %p144 = scmp.eq.s32.totalorder %s143, 0
    %s146 = sadd.s32 %s145, 1
    %s147 = scalar_select %p144, %s145, %s146
    %p150 = pneg %p144
    %p151 = scmp.eq.s32.totalorder %s11, 1
    %p152 = por %p150, %p151
    %p153 = scmp.ne.s32.totalorder %s145, %s148
    %p154 = scmp.eq.s32.totalorder %s11, 0
    %p155 = por %p153, %p154
    %p156 = scmp.ne.s32.totalorder %s145, %s148
    %p157 = scmp.eq.s32.totalorder %s16, 1
    %p158 = por %p156, %p157
    %p159 = scmp.ne.s32.totalorder %s148, %s149
    %p160 = scmp.eq.s32.totalorder %s16, 0
    %p161 = por %p159, %p160
    %p162 = scmp.ne.s32.totalorder %s148, %s149
    %p163 = scmp.eq.s32.totalorder %s17, 1
    %p164 = por %p162, %p163
    %p166 = scmp.ne.s32.totalorder %s149, %s165
    %p167 = scmp.eq.s32.totalorder %s17, 0
    %p168 = por %p166, %p167
    %p169 = scmp.le.s32.totalorder 1, %s11
    %p170 = scmp.lt.s32.totalorder %s11, 3
    %p171 = pnand %p169, %p170
    %p172 = pneg %p171
    // Predicated region
    $region9: #{fused_forward.1} parent=5 // pred_check
      _
    $region10: #{fused_forward.1} parent=5 // pred_check_branch
      %174 = sbr.rel (%p171) target = $region12
    $region11: #{fused_forward.1} parent=5 // pred_region
      %s175 = ssub.s32 %s11, 1
      // Predicated region
      $region13: #{fused_forward.1} parent=11 // pred_check
        %p176 = pneg %p72
      $region14: #{fused_forward.1} parent=11 // pred_check_branch
        %178 = sbr.rel (%p176) target = $region16
      $region15: #{fused_forward.1} parent=11 // pred_region
        _
      $region16: #{fused_forward.1} parent=11 // pred_fallthru
        _
      // Predicated region
      $region17: #{fused_forward.1} parent=11 // pred_check
        %p179 = pneg %p93
      $region18: #{fused_forward.1} parent=11 // pred_check_branch
        %181 = sbr.rel (%p179) target = $region20
      $region19: #{fused_forward.1} parent=11 // pred_region
        _
      $region20: #{fused_forward.1} parent=11 // pred_fallthru
        _
      // Predicated region
      $region21: #{fused_forward.1} parent=11 // pred_check
        %p182 = pneg %p114
      $region22: #{fused_forward.1} parent=11 // pred_check_branch
        %184 = sbr.rel (%p182) target = $region24
      $region23: #{fused_forward.1} parent=11 // pred_region
        _
      $region24: #{fused_forward.1} parent=11 // pred_fallthru
        _
      // Predicated region
      $region25: #{fused_forward.1} parent=11 // pred_check
        %p185 = pneg %p135
      $region26: #{fused_forward.1} parent=11 // pred_check_branch
        %187 = sbr.rel (%p185) target = $region28
      $region27: #{fused_forward.1} parent=11 // pred_region
        _
      $region28: #{fused_forward.1} parent=11 // pred_fallthru
        _
    $region12: #{fused_forward.1} parent=5 // pred_fallthru
      _
    %p188 = scmp.lt.s32.totalorder %s11, 2
    // Predicated region
    $region29: #{fused_forward.1} parent=5 // pred_check
      %p189 = pneg %p188
    $region30: #{fused_forward.1} parent=5 // pred_check_branch
      %191 = sbr.rel (%p189) target = $region32
    $region31: #{fused_forward.1} parent=5 // pred_region
      // Predicated region
      $region33: #{fused_forward.1} parent=31 // pred_check
        %p192 = pneg %p45
      $region34: #{fused_forward.1} parent=31 // pred_check_branch
        %194 = sbr.rel (%p192) target = $region36
      $region35: #{fused_forward.1} parent=31 // pred_region
        %p195 = scmp.lt.s32.totalorder %s18, 1
        %s196 = scalar_select %p195, %s18, 1
        %p197 = scmp.lt.s32.totalorder %s19, 0
        %s198 = scalar_select %p197, %s19, 0
        %s199 = smul.addr %s196, 4
        %s200 = sadd.s32 %s198, %s199
        %s201 = smul.addr %s200, 4
        %s202 = scalar_lea.vmem %s0, %s201
      $region36: #{fused_forward.1} parent=31 // pred_fallthru
        _
    $region32: #{fused_forward.1} parent=5 // pred_fallthru
      _
    %p203 = scmp.le.s32.totalorder 1, %s11
    %p204 = scmp.lt.s32.totalorder %s11, 3
    %p205 = pnand %p203, %p204
    %p206 = pneg %p205
    // Predicated region
    $region37: #{fused_forward.1} parent=5 // pred_check
      _
    $region38: #{fused_forward.1} parent=5 // pred_check_branch
      %208 = sbr.rel (%p205) target = $region40
    $region39: #{fused_forward.1} parent=5 // pred_region
      %s209 = ssub.s32 %s11, 1
      %p210 = scmp.lt.s32.totalorder %s20, 1
      %s211 = scalar_select %p210, %s20, 1
      %p212 = scmp.lt.s32.totalorder %s21, 0
      %s213 = scalar_select %p212, %s21, 0
      %s214 = smul.addr %s211, 4
      %s215 = sadd.s32 %s213, %s214
      %s216 = smul.addr %s215, 4
      %s217 = scalar_lea.vmem %s0, %s216
      %p218 = pneg %p51
      %p219 = pneg %p48
      %p220 = pneg %p72
      %p221 = pneg %p69
      %p222 = pneg %p93
      %p223 = pneg %p90
      %p224 = pneg %p114
      %p225 = pneg %p111
      %p226 = pneg %p135
      %p227 = pneg %p132
      %p228 = pneg %p161
      %p229 = pneg %p158
      %p230 = scmp.lt.s32.totalorder %s20, 1
      %s231 = scalar_select %p230, %s20, 1
      %s232 = smul.addr %s231, 2
      %s233 = scalar_lea.vmem %s5, %s232
      %p234 = scmp.lt.s32.totalorder %s20, 1
      %s235 = scalar_select %p234, %s20, 1
      %p236 = scmp.lt.s32.totalorder %s21, 0
      %s237 = scalar_select %p236, %s21, 0
      %s238 = smul.addr %s235, 4
      %s239 = sadd.s32 %s237, %s238
      %s240 = smul.addr %s239, 4
      %s241 = scalar_lea.vmem %s0, %s240
      %p242 = scmp.lt.s32.totalorder %s20, 1
      %s243 = scalar_select %p242, %s20, 1
      %s244 = smul.addr %s243, 2
      %s245 = scalar_lea.vmem %s5, %s244
      %p247 = scmp.eq.s32.totalorder %s21, 0
      // Predicated region
      $region41: #{fused_forward.1} parent=39 // pred_check
        %p248 = pneg %p247
      $region42: #{fused_forward.1} parent=39 // pred_check_branch
        %250 = sbr.rel (%p248) target = $region44
      $region43: #{fused_forward.1} parent=39 // pred_region
        %vm251 = vcmask 7168
        %252 = vst.msk [vmem:[#allocation2] sm:$0xff] %vm251, -inf
        %253 = vst.msk [vmem:[#allocation2 + $0x8] sm:$0xff] %vm251, -inf
        %254 = vst.msk [vmem:[#allocation2 + $0x10] sm:$0xff] %vm251, -inf
        %255 = vst.msk [vmem:[#allocation2 + $0x18] sm:$0xff] %vm251, -inf
        %256 = vst.msk [vmem:[#allocation3] sm:$0xff] %vm251, 0.0
        %257 = vst.msk [vmem:[#allocation3 + $0x8] sm:$0xff] %vm251, 0.0
        %258 = vst.msk [vmem:[#allocation3 + $0x10] sm:$0xff] %vm251, 0.0
        %259 = vst.msk [vmem:[#allocation3 + $0x18] sm:$0xff] %vm251, 0.0
      $region44: #{fused_forward.1} parent=39 // pred_fallthru
        _
      %v260 = vld [vmem:[%s241] sm:$0xf]
      %v261 = vld [vmem:[%s241 + $0x4] sm:$0xf]
      %v262 = vld [vmem:[%s241 + $0x8] sm:$0xf]
      %v263 = vld [vmem:[%s241 + $0xc] sm:$0x3]
      %v264 = vld [vmem:[%s1] sm:$0xf]
      %v265 = vld [vmem:[%s1 + $0x4] sm:$0xf]
      %v266 = vld [vmem:[%s1 + $0x8] sm:$0xf]
      %v267 = vld [vmem:[%s1 + $0xc] sm:$0xf]
      %v268 = vld [vmem:[%s2] sm:$0xff]
      %v269 = vld [vmem:[%s2 + $0x8] sm:$0xff]
      %v270 = vld [vmem:[%s2 + $0x10] sm:$0xff]
      %v271 = vld [vmem:[%s2 + $0x18] sm:$0xff]
      %273 = vset.pattern.permute.xlu0 0
      %274 = vperm.xlu0 %273, %v268
      %v275 = vpop.permute.xlu0 %274
      %278 = vset.pattern.permute.xlu0 0
      %279 = vperm.xlu0 %278, %v269
      %v280 = vpop.permute.xlu0 %279
      %283 = vset.pattern.permute.xlu0 0
      %284 = vperm.xlu0 %283, %v270
      %v285 = vpop.permute.xlu0 %284
      %288 = vset.pattern.permute.xlu0 0
      %289 = vperm.xlu0 %288, %v271
      %v290 = vpop.permute.xlu0 %289
      %v296 = vunpack.c.l.b16 %v264
      %v297 = vunpack.c.l.b16 %v265
      %v298 = vunpack.c.l.b16 %v266
      %v299 = vunpack.c.l.b16 %v267
      %v300 = vpack.c.b16 %v297, %v296
      %v301 = vpack.c.b16 %v299, %v298
      %v306 = vunpack.c.l.b16 %v260
      %v307 = vunpack.c.l.b16 %v261
      %v308 = vunpack.c.l.b16 %v262
      %v309 = vunpack.c.l.b16 %v263
      %v310 = vpack.c.b16 %v307, %v306
      %v311 = vpack.c.b16 %v309, %v308
      %vm313 = vcmask 220160
      %v315 = vsel %vm313, %v300, 0
      %v318 = vsel %vm313, %v301, 0
      %vm320 = vcmask 1044480
      %vm321 = vcmask 1045504
      %v322 = vsel %vm320, 4294967295, 65535
      %v323 = vsel %vm321, %v322, 0
      %v325 = vand.u32 %v311, %v323
      %327 = vmatprep.subr.bf16.mxu0 0
      %328 = vmatpush1.bf16.msra.mxu0 %v310
      %329 = vmatprep.subr.bf16.mxu0 0
      %330 = vmatpush1.bf16.msra.mxu0 %v325
      %331 = vmatprep.subr.bf16.mxu0 0
      %332 = vmatpush1.bf16.msra.mxu0 0
      %333 = vmatprep.subr.bf16.mxu0 0
      %334 = vmatpush1.bf16.msra.mxu0 0
      %335 = vmatprep.subr.bf16.mxu0 0
      %336 = vmatpush1.bf16.msra.mxu0 0
      %337 = vmatprep.subr.bf16.mxu0 0
      %338 = vmatpush1.bf16.msra.mxu0 0
      %339 = vmatprep.subr.bf16.mxu0 0
      %340 = vmatpush1.bf16.msra.mxu0 0
      %341 = vmatprep.subr.bf16.mxu0 0
      %342 = vmatpush1.bf16.msra.mxu0 0
      %343 = vmatprep.subr.bf16.mxu0 0
      %344 = vmatpush1.bf16.msra.mxu0 0
      %345 = vmatprep.subr.bf16.mxu0 0
      %346 = vmatpush1.bf16.msra.mxu0 0
      %347 = vmatprep.subr.bf16.mxu0 0
      %348 = vmatpush1.bf16.msra.mxu0 0
      %349 = vmatprep.subr.bf16.mxu0 0
      %350 = vmatpush1.bf16.msra.mxu0 0
      %351 = vmatprep.subr.bf16.mxu0 0
      %352 = vmatpush1.bf16.msra.mxu0 0
      %353 = vmatprep.subr.bf16.mxu0 0
      %354 = vmatpush1.bf16.msra.mxu0 0
      %355 = vmatprep.subr.bf16.mxu0 0
      %356 = vmatpush1.bf16.msra.mxu0 0
      %357 = vmatprep.subr.bf16.mxu0 0
      %358 = vmatpush1.bf16.msra.mxu0 0
      %359 = vmatprep.mubr.bf16.mxu0 0
      %360 = vmatmul.mubr.bf16.gmra.mrb[0].mxu0 %v315
      %v361 = vpop.f32.mrb[0].mxu0
      %v362 = vadd.f32 %v275, %v361
      %v363 = vpop.f32.mrb[0].mxu0
      %v364 = vpop.f32.mrb[0].mxu0
      %v365 = vadd.f32 %v280, %v364
      %v366 = vpop.f32.mrb[0].mxu0
      %367 = vmatprep.mubr.bf16.mxu0 0
      %368 = vmatmul.mubr.bf16.gmra.mrb[0].mxu0 %v318
      %v369 = vpop.f32.mrb[0].mxu0
      %v370 = vadd.f32 %v285, %v369
      %v371 = vpop.f32.mrb[0].mxu0
      %v372 = vpop.f32.mrb[0].mxu0
      %v373 = vadd.f32 %v290, %v372
      %v374 = vpop.f32.mrb[0].mxu0
      %375 = vdwg.mxu0
      %v376 = vxor.u32 %v362, 2147483648
      %v377 = vxor.u32 %v365, 2147483648
      %v378 = vxor.u32 %v370, 2147483648
      %v379 = vxor.u32 %v373, 2147483648
      %v380 = vmul.f32 %v376, 1.442695
      %v381 = vpow.pop %v380
      %v382 = vmul.f32 %v377, 1.442695
      %v383 = vpow.pop %v382
      %v384 = vmul.f32 %v378, 1.442695
      %v385 = vpow.pop %v384
      %v386 = vmul.f32 %v379, 1.442695
      %v387 = vpow.pop %v386
      %v388 = vadd.f32 %v381, 1.0
      %v389 = vadd.f32 %v383, 1.0
      %v390 = vadd.f32 %v385, 1.0
      %v391 = vadd.f32 %v387, 1.0
      %v392 = vrcp.pop %v388
      %v393 = vmul.f32 1.0, %v392
      %v394 = vrcp.pop %v389
      %v395 = vmul.f32 1.0, %v394
      %v396 = vrcp.pop %v390
      %v397 = vmul.f32 1.0, %v396
      %v398 = vrcp.pop %v391
      %v399 = vmul.f32 1.0, %v398
      %v400 = vmul.f32 %v362, %v393
      %v401 = vmul.f32 %v365, %v395
      %v402 = vmul.f32 %v370, %v397
      %v403 = vmul.f32 %v373, %v399
      %v404 = vld [vmem:[#allocation2] sm:$0xff]
      %v405 = vld [vmem:[#allocation2 + $0x8] sm:$0xff]
      %v406 = vld [vmem:[#allocation2 + $0x10] sm:$0xff]
      %v407 = vld [vmem:[#allocation2 + $0x18] sm:$0xff]
      %vm408 = vcmask 523264
      %v409 = vsel %vm408, %v400, -inf
      %410 = vmax.xlane.f32.xlu0 %v409
      %v411 = vpop.xlane.xlu0 %410
      %v412 = vsel %vm408, %v401, -inf
      %413 = vmax.xlane.f32.xlu0 %v412
      %v414 = vpop.xlane.xlu0 %413
      %v415 = vsel %vm408, %v402, -inf
      %416 = vmax.xlane.f32.xlu0 %v415
      %v417 = vpop.xlane.xlu0 %416
      %v418 = vsel %vm408, %v403, -inf
      %419 = vmax.xlane.f32.xlu0 %v418
      %v420 = vpop.xlane.xlu0 %419
      %v421 = vmax.f32 %v404, %v411
      %v422 = vmax.f32 %v405, %v414
      %v423 = vmax.f32 %v406, %v417
      %v424 = vmax.f32 %v407, %v420
      %vm425 = vcmask 7168
      %426 = vst.msk [vmem:[#allocation2] sm:$0xff] %vm425, %v421
      %427 = vst.msk [vmem:[#allocation2 + $0x8] sm:$0xff] %vm425, %v422
      %428 = vst.msk [vmem:[#allocation2 + $0x10] sm:$0xff] %vm425, %v423
      %429 = vst.msk [vmem:[#allocation2 + $0x18] sm:$0xff] %vm425, %v424
      %v430 = vld [vmem:[#allocation3] sm:$0xff]
      %v431 = vld [vmem:[#allocation3 + $0x8] sm:$0xff]
      %v432 = vld [vmem:[#allocation3 + $0x10] sm:$0xff]
      %v433 = vld [vmem:[#allocation3 + $0x18] sm:$0xff]
      %v434 = vsel %vm408, %v400, 0.0
      %435 = vadd.xlane.f32.xlu0 %v434
      %v436 = vpop.xlane.xlu0 %435
      %v437 = vsel %vm408, %v401, 0.0
      %438 = vadd.xlane.f32.xlu0 %v437
      %v439 = vpop.xlane.xlu0 %438
      %v440 = vsel %vm408, %v402, 0.0
      %441 = vadd.xlane.f32.xlu0 %v440
      %v442 = vpop.xlane.xlu0 %441
      %v443 = vsel %vm408, %v403, 0.0
      %444 = vadd.xlane.f32.xlu0 %v443
      %v445 = vpop.xlane.xlu0 %444
      %v446 = vadd.f32 %v430, %v436
      %v447 = vadd.f32 %v431, %v439
      %v448 = vadd.f32 %v432, %v442
      %v449 = vadd.f32 %v433, %v445
      %450 = vst.msk [vmem:[#allocation3] sm:$0xff] %vm425, %v446
      %451 = vst.msk [vmem:[#allocation3 + $0x8] sm:$0xff] %vm425, %v447
      %452 = vst.msk [vmem:[#allocation3 + $0x10] sm:$0xff] %vm425, %v448
      %453 = vst.msk [vmem:[#allocation3 + $0x18] sm:$0xff] %vm425, %v449
      // Predicated region
      $region45: #{fused_forward.1} parent=39 // pred_check
        %p454 = pneg %p247
      $region46: #{fused_forward.1} parent=39 // pred_check_branch
        %456 = sbr.rel (%p454) target = $region48
      $region47: #{fused_forward.1} parent=39 // pred_region
        %v457 = vld [vmem:[#allocation2] sm:$0xff]
        %v458 = vld [vmem:[#allocation2 + $0x8] sm:$0xff]
        %v459 = vld [vmem:[#allocation2 + $0x10] sm:$0xff]
        %v460 = vld [vmem:[#allocation2 + $0x18] sm:$0xff]
        %v461 = vld [vmem:[#allocation3] sm:$0xff]
        %v462 = vld [vmem:[#allocation3 + $0x8] sm:$0xff]
        %v463 = vld [vmem:[#allocation3 + $0x10] sm:$0xff]
        %v464 = vld [vmem:[#allocation3 + $0x18] sm:$0xff]
        %v465 = vmul.f32 %v461, 0.015625
        %v466 = vmul.f32 %v462, 0.015625
        %v467 = vmul.f32 %v463, 0.015625
        %v468 = vmul.f32 %v464, 0.015625
        %v469 = vld [vmem:[%s3] sm:$0xff]
        %v470 = vld [vmem:[%s3 + $0x8] sm:$0xff]
        %v471 = vld [vmem:[%s3 + $0x10] sm:$0xff]
        %v472 = vld [vmem:[%s3 + $0x18] sm:$0xff]
        %v473 = vld [vmem:[%s3 + $0x20] sm:$0xff]
        %v474 = vld [vmem:[%s3 + $0x28] sm:$0xff]
        %v475 = vld [vmem:[%s3 + $0x30] sm:$0xff]
        %v476 = vld [vmem:[%s3 + $0x38] sm:$0xff]
        %478 = vset.pattern.permute.xlu0 0
        %479 = vperm.xlu0 %478, %v457
        %v480 = vpop.permute.xlu0 %479
        %483 = vset.pattern.permute.xlu0 0
        %484 = vperm.xlu0 %483, %v458
        %v485 = vpop.permute.xlu0 %484
        %488 = vset.pattern.permute.xlu0 0
        %489 = vperm.xlu0 %488, %v459
        %v490 = vpop.permute.xlu0 %489
        %493 = vset.pattern.permute.xlu0 0
        %494 = vperm.xlu0 %493, %v460
        %v495 = vpop.permute.xlu0 %494
        %v497 = vmul.f32 %v469, %v480
        %v498 = vmul.f32 %v470, %v480
        %v499 = vmul.f32 %v471, %v485
        %v500 = vmul.f32 %v472, %v485
        %v501 = vmul.f32 %v473, %v490
        %v502 = vmul.f32 %v474, %v490
        %v503 = vmul.f32 %v475, %v495
        %v504 = vmul.f32 %v476, %v495
        %v505 = vadd.f32 %v497, %v499
        %v506 = vadd.f32 %v505, %v501
        %v507 = vadd.f32 %v506, %v503
        %v508 = vrot.slane %v507, 4
        %v509 = vadd.f32 %v507, %v508
        %v510 = vrot.slane %v509, 2
        %v511 = vadd.f32 %v509, %v510
        %v512 = vrot.slane %v511, 1
        %v513 = vadd.f32 %v511, %v512
        %v514 = vadd.f32 %v498, %v500
        %v515 = vadd.f32 %v514, %v502
        %v516 = vadd.f32 %v515, %v504
        %v517 = vrot.slane %v516, 4
        %v518 = vadd.f32 %v516, %v517
        %v519 = vrot.slane %v518, 2
        %v520 = vadd.f32 %v518, %v519
        %v521 = vrot.slane %v520, 1
        %v522 = vadd.f32 %v520, %v521
        %v523 = vld [vmem:[%s3 + $0x40] sm:$0xff]
        %v524 = vld [vmem:[%s3 + $0x48] sm:$0xff]
        %v525 = vld [vmem:[%s3 + $0x50] sm:$0xff]
        %v526 = vld [vmem:[%s3 + $0x58] sm:$0xff]
        %v527 = vld [vmem:[%s3 + $0x60] sm:$0xff]
        %v528 = vld [vmem:[%s3 + $0x68] sm:$0xff]
        %v529 = vld [vmem:[%s3 + $0x70] sm:$0xff]
        %v530 = vld [vmem:[%s3 + $0x78] sm:$0xff]
        %532 = vset.pattern.permute.xlu0 0
        %533 = vperm.xlu0 %532, %v465
        %v534 = vpop.permute.xlu0 %533
        %537 = vset.pattern.permute.xlu0 0
        %538 = vperm.xlu0 %537, %v466
        %v539 = vpop.permute.xlu0 %538
        %542 = vset.pattern.permute.xlu0 0
        %543 = vperm.xlu0 %542, %v467
        %v544 = vpop.permute.xlu0 %543
        %547 = vset.pattern.permute.xlu0 0
        %548 = vperm.xlu0 %547, %v468
        %v549 = vpop.permute.xlu0 %548
        %v551 = vmul.f32 %v523, %v534
        %v552 = vmul.f32 %v524, %v534
        %v553 = vmul.f32 %v525, %v539
        %v554 = vmul.f32 %v526, %v539
        %v555 = vmul.f32 %v527, %v544
        %v556 = vmul.f32 %v528, %v544
        %v557 = vmul.f32 %v529, %v549
        %v558 = vmul.f32 %v530, %v549
        %v559 = vadd.f32 %v551, %v553
        %v560 = vadd.f32 %v559, %v555
        %v561 = vadd.f32 %v560, %v557
        %v562 = vrot.slane %v561, 4
        %v563 = vadd.f32 %v561, %v562
        %v564 = vrot.slane %v563, 2
        %v565 = vadd.f32 %v563, %v564
        %v566 = vrot.slane %v565, 1
        %v567 = vadd.f32 %v565, %v566
        %v568 = vadd.f32 %v552, %v554
        %v569 = vadd.f32 %v568, %v556
        %v570 = vadd.f32 %v569, %v558
        %v571 = vrot.slane %v570, 4
        %v572 = vadd.f32 %v570, %v571
        %v573 = vrot.slane %v572, 2
        %v574 = vadd.f32 %v572, %v573
        %v575 = vrot.slane %v574, 1
        %v576 = vadd.f32 %v574, %v575
        %v577 = vadd.f32 %v513, %v567
        %v578 = vadd.f32 %v522, %v576
        %v579 = vld [vmem:[%s4] sm:$0x3]
        %v581 = vlaneseq
        %v582 = vshrl.u32 %v581, 7
        %v583 = vsub.s32 0, %v582
        %v584 = vrot.slane %v579, %v583
        %v585 = vlaneseq
        %v586 = vshrl.u32 %v585, 7
        %v587 = vsub.s32 1, %v586
        %v588 = vrot.slane %v579, %v587
        %v591 = vadd.f32 %v577, %v584
        %v592 = vadd.f32 %v578, %v588
        %v595 = vcombine.low %v591, %v592
        %v597 = vunpack.c.l.s4 1966171168
        %v598 = vunpack.c.0.s8 %v597
        %v599 = vlaneseq
        %v600 = vshrl.u32 %v599, 7
        %v601 = vsub.s32 %v598, %v600
        %v602 = vrot.slane %v595, %v601
        %v604 = vunpack.c.l.s4 1966171168
        %v605 = vunpack.c.0.s8 %v604
        %v606 = vlaneseq
        %v607 = vshrl.u32 %v606, 7
        %v608 = vsub.s32 %v605, %v607
        %v609 = vrot.slane %v602, %v608
        %v611 = vlaneseq
        %vm612 = vcmp.ge.s32.totalorder %v611, 0
        %vm613 = vcmp.lt.s32.totalorder %v611, 256
        %vm614 = vmand %vm612, %vm613
        %615 = vst.msk [vmem:[%s245] sm:$0x3] %vm614, %v609
      $region48: #{fused_forward.1} parent=39 // pred_fallthru
        _
      %p616 = scmp.lt.s32.totalorder %s20, 1
      %s617 = scalar_select %p616, %s20, 1
      %s618 = smul.addr %s617, 2
      %s619 = scalar_lea.vmem %s5, %s618
      // Predicated region
      $region49: #{fused_forward.1} parent=39 // pred_check
        %p620 = pneg %p158
      $region50: #{fused_forward.1} parent=39 // pred_check_branch
        %622 = sbr.rel (%p620) target = $region52
      $region51: #{fused_forward.1} parent=39 // pred_region
        _
      $region52: #{fused_forward.1} parent=39 // pred_fallthru
        _
    $region40: #{fused_forward.1} parent=5 // pred_fallthru
      _
    %p623 = scmp.le.s32.totalorder 2, %s11
    // Predicated region
    $region53: #{fused_forward.1} parent=5 // pred_check
      %p624 = pneg %p623
    $region54: #{fused_forward.1} parent=5 // pred_check_branch
      %626 = sbr.rel (%p624) target = $region56
    $region55: #{fused_forward.1} parent=5 // pred_region
      %s627 = ssub.s32 %s11, 2
      // Predicated region
      $region57: #{fused_forward.1} parent=55 // pred_check
        %p628 = pneg %p164
      $region58: #{fused_forward.1} parent=55 // pred_check_branch
        %630 = sbr.rel (%p628) target = $region60
      $region59: #{fused_forward.1} parent=55 // pred_region
        %p631 = scmp.lt.s32.totalorder %s22, 1
        %s632 = scalar_select %p631, %s22, 1
        %s633 = smul.addr %s632, 2
        %s634 = scalar_lea.vmem %s5, %s633
      $region60: #{fused_forward.1} parent=55 // pred_fallthru
        _
    $region56: #{fused_forward.1} parent=5 // pred_fallthru
      _
  $region6: #{fused_forward.1} parent=0 // loop_footer
    %s15 = sadd.s32 1, %s11
  $region7: #{fused_forward.1} parent=0 // loop_footer_branch
    %10 = sbr.rel target = $region3
  $region8: #{fused_forward.1} parent=0 // loop_exit
    _

</llo_original>
